<compile_context>
chip_gen: v6e
topology: v6e:2x2x1
jax: 0.10.0
libtpu: 0.0.40
codegen_flags: <defaults>
</compile_context>

<pallas_src>
import functools
import numpy as np

import jax
import jax.numpy as jnp
from jax.experimental import pallas as pl
from jax.experimental.pallas import tpu as pltpu

HIDDEN = 64          # small stand-in for hidden_size=768
MAX_WIDTH = 4
LN_EPS = 1e-5
FOCAL_ALPHA = 0.25
FOCAL_GAMMA = 2.0    # gamma == 2 -> square() in the kernel (see _focal_pow)
TILE_N = 256         # max rows per grid step (multiple of 128 -> lane-dense out)


def _round_up(x, m):
    return ((x + m - 1) // m) * m


def _num_tensorcores_per_chip():
    """2 for v7x (two TensorCores per chip), else 1 (v5e / v6e)."""
    try:
        kind = jax.devices()[0].device_kind.lower()
    except Exception:
        return 1
    return 2 if ("v7" in kind or "7x" in kind) else 1


def _choose_tiling(n):
    """Pick (tile_n, n_tiles). Only multi-TC parts get a forced, balanced grid>=2."""
    num_tc = _num_tensorcores_per_chip()
    if num_tc >= 2:
        # Balanced split across TensorCores; tiles are multiples of 128 so the
        # (1, tile_n) output block stays lane-dense when the grid has >1 step.
        tile_n = min(TILE_N, max(128, _round_up(-(-n // num_tc), 128)))
        n_tiles = max(num_tc, -(-n // tile_n))
    else:
        # Single TensorCore: the grid is a serial loop, never pad an extra tile.
        tile_n = min(TILE_N, _round_up(n, 8))
        n_tiles = -(-n // tile_n)
    return tile_n, n_tiles


# ---------------- Kernel A: span attention + LayerNorm + folded decoder ----------------
def fused_span_kernel(tok_ref, width_ref, attw_ref, gw_ref, ball_ref, out_ref):
    # tok_ref:   (W, tile_n, D) bf16  -- span token windows, lane-dense in D
    # width_ref: (tile_n, 1)    int32 -- effective span width per row
    # attw_ref:  (1, D)         f32   -- span-attention scorer weights
    # gw_ref:    (1, D)         f32   -- ln_gamma * w_eff (folded decoder row)
    # ball_ref:  (1, 1)         f32   -- ln_beta @ w_eff + b_eff  (SMEM scalar)
    # out_ref:   (1, tile_n)    f32   -- lane-dense logits row
    W = tok_ref.shape[0]
    attw = attw_ref[...]                                   # (1, D)
    width = width_ref[...]                                 # (tile_n, 1) int32

    # ---- online-softmax span attention: one token slab live at a time ----
    t = tok_ref[0].astype(jnp.float32)                     # (tile_n, D)
    s = jnp.sum(t * attw, axis=-1, keepdims=True)          # (tile_n, 1)
    mask = (width > 0).astype(jnp.float32)                 # (tile_n, 1)
    m = s                                                  # running max
    denom = mask                                           # exp(s - m) = 1
    acc = mask * t                                         # (tile_n, D)
    for w in range(1, W):
        t = tok_ref[w].astype(jnp.float32)
        s = jnp.sum(t * attw, axis=-1, keepdims=True)
        mask = (width > w).astype(jnp.float32)
        m_new = jnp.maximum(m, s)
        scale = jnp.exp(m - m_new)
        p = jnp.exp(s - m_new) * mask                      # mask-multiply only
        denom = denom * scale + p
        acc = acc * scale + p * t
        m = m_new

    inv = pl.reciprocal(jnp.maximum(denom, 1e-9), approx=True)   # EUP, ~free
    rep = acc * inv                                        # (tile_n, D)

    # ---- LayerNorm statistics (affine folded into gw / b_all) ----
    mu = jnp.mean(rep, axis=-1, keepdims=True)
    var = jnp.mean(jnp.square(rep - mu), axis=-1, keepdims=True)
    xhat = (rep - mu) * jax.lax.rsqrt(var + LN_EPS)

    # ---- folded decoder: single Linear(D, 1), emitted lane-dense as (1, tile_n) ----
    logit = jax.lax.dot_general(
        gw_ref[...], xhat,
        dimension_numbers=(((1,), (1,)), ((), ())),
        preferred_element_type=jnp.float32)                # (1, tile_n)
    out_ref[...] = logit + ball_ref[0, 0]


def fused_span_forward(tokens_wnd, eff_width, params, *, tile_n):
    w, n, d = tokens_wnd.shape
    grid = (n // tile_n,)
    const2 = lambda i: (0, 0)
    # NOTE: at the real hidden=768 scale on v7x (64 MiB VMEM), budget VMEM
    # explicitly: bf16 token block = W*tile_n*768*2B per buffer (x2 for double
    # buffering), give the constant-index weight rows pipeline_mode=pl.Buffered(1),
    # and set pltpu.CompilerParams(vmem_limit_bytes=...) instead of the default.
    return pl.pallas_call(
        fused_span_kernel,
        out_shape=jax.ShapeDtypeStruct((1, n), jnp.float32),
        grid_spec=pltpu.PrefetchScalarGridSpec(
            num_scalar_prefetch=0,
            grid=grid,
            in_specs=[
                pl.BlockSpec((w, tile_n, d), lambda i: (0, i, 0)),   # tokens (W,N,D) bf16
                pl.BlockSpec((tile_n, 1), lambda i: (i, 0)),         # eff widths (int32)
                pl.BlockSpec((1, d), const2),                        # attention scorer w
                pl.BlockSpec((1, d), const2),                        # gw = ln_g * w_eff
                pl.BlockSpec(memory_space=pltpu.MemorySpace.SMEM),   # b_all scalar
            ],
            out_specs=pl.BlockSpec((1, tile_n), lambda i: (0, i)),   # lane-dense logits
        ),
        compiler_params=pltpu.CompilerParams(dimension_semantics=("parallel",)),
    )(tokens_wnd, eff_width, params["att_w"], params["gw"], params["b_all"])


# ----------------------------- Kernel B: binary focal loss -----------------------------
def _focal_pow(x):
    # FOCAL_GAMMA is folded at trace time; gamma == 2.0 uses the cheap square().
    if FOCAL_GAMMA == 2.0:
        return jnp.square(x)
    return jnp.power(x, FOCAL_GAMMA)


def focal_loss_kernel(logit_ref, label_ref, valid_ref, out_ref):
    x = logit_ref[...].astype(jnp.float32)       # (1, N)
    y = label_ref[...]
    v = valid_ref[...]

    # stable softplus pieces (equivalent to log1p(exp(-|x|)) at these magnitudes)
    abs_x = jnp.abs(x)
    log_term = jnp.log(1.0 + jnp.exp(-abs_x))
    ce_pos = jnp.maximum(-x, 0.0) + log_term     # -log sigmoid(x)
    ce_neg = jnp.maximum(x, 0.0) + log_term      # -log(1 - sigmoid(x))
    p = jnp.exp(-ce_pos)                         # sigmoid(x), reuses ce_pos

    per = (FOCAL_ALPHA * _focal_pow(1.0 - p) * y * ce_pos
           + (1.0 - FOCAL_ALPHA) * _focal_pow(p) * (1.0 - y) * ce_neg) * v

    out_ref[0] = jnp.sum(per) / jnp.maximum(jnp.sum(v), 1.0)


def focal_loss(logits_row, labels_row, valid_row):
    # One grid step over the whole lane-dense row (no per-step grid overhead).
    n = logits_row.shape[1]
    return pl.pallas_call(
        focal_loss_kernel,
        out_shape=jax.ShapeDtypeStruct((1,), jnp.float32),
        grid_spec=pltpu.PrefetchScalarGridSpec(
            num_scalar_prefetch=0,
            grid=(1,),
            in_specs=[pl.BlockSpec((1, n), lambda i: (0, 0))] * 3,
            out_specs=pl.BlockSpec(memory_space=pltpu.MemorySpace.SMEM),
        ),
        compiler_params=pltpu.CompilerParams(dimension_semantics=("arbitrary",)),
    )(logits_row, labels_row, valid_row)[0]


# ----------------------------- glue: gather, params, forward -----------------------------
def gather_span_tokens(embeddings, span_idx, span_mask, max_width):
    """Gather span token windows in (W, N, D) bf16 layout + per-span widths (int32)."""
    # TODO(synk): pull this gather into the fused kernel (memory_space=pl.ANY on
    # embeddings + scalar-prefetched span starts driving per-row make_async_copy)
    # to avoid materializing the duplicated [W, N, D] tokens array in HBM.
    B, L, D = embeddings.shape
    S = span_idx.shape[1]
    masked_span_idx = span_idx * span_mask[..., None].astype(span_idx.dtype)
    starts = masked_span_idx[..., 0]                       # [B, S]
    ends = masked_span_idx[..., 1]                         # [B, S]

    offs = jnp.arange(max_width, dtype=masked_span_idx.dtype)      # [W]
    pos = starts[None, :, :] + offs[:, None, None]                 # [W, B, S]
    pos_c = jnp.clip(pos, 0, L - 1)
    batch_ix = jnp.arange(B)[None, :, None]                        # [1, B, 1]
    tokens = embeddings[batch_ix, pos_c]                           # [W, B, S, D]
    tokens_wnd = tokens.reshape(max_width, B * S, D).astype(jnp.bfloat16)

    # number of valid window positions: w valid iff w < min(end-start+1, L-start)
    eff = jnp.minimum(ends - starts + 1, L - starts)
    eff = jnp.clip(eff, 0, max_width).reshape(B * S, 1).astype(jnp.int32)
    return masked_span_idx, tokens_wnd, eff


def init_params(key, hidden=HIDDEN):
    """Raw module weights + the exact offline fold of the activation-free decoder."""
    ks = jax.random.split(key, 9)
    s = 0.1
    att_w = jax.random.normal(ks[0], (1, hidden), jnp.float32) * 0.2
    ln_g = jnp.ones((1, hidden), jnp.float32)
    ln_b = jnp.zeros((1, hidden), jnp.float32)
    w1 = jax.random.normal(ks[1], (hidden, 512), jnp.float32) * s
    b1 = jax.random.normal(ks[2], (1, 512), jnp.float32) * s
    w2 = jax.random.normal(ks[3], (512, 256), jnp.float32) * s
    b2 = jax.random.normal(ks[4], (1, 256), jnp.float32) * s
    w3 = jax.random.normal(ks[5], (256, 128), jnp.float32) * s
    b3 = jax.random.normal(ks[6], (1, 128), jnp.float32) * s
    w4 = jax.random.normal(ks[7], (128, 1), jnp.float32) * s
    b4 = jax.random.normal(ks[8], (1, 1), jnp.float32) * s

    # Exact fold (no nonlinearities between the Linears; Dropout is identity):
    w_eff = w1 @ w2 @ w3 @ w4                                 # (hidden, 1)
    b_eff = ((b1 @ w2 + b2) @ w3 + b3) @ w4 + b4              # (1, 1)
    gw = ln_g * w_eff.T                                       # (1, hidden)
    b_all = ln_b @ w_eff + b_eff                              # (1, 1)

    return {"att_w": att_w, "gw": gw, "b_all": b_all}


@jax.jit
def mention_detector_forward(params, embeddings, span_idx, span_mask, span_labels):
    B, L, D = embeddings.shape
    S = span_idx.shape[1]
    masked_span_idx, tokens_wnd, eff_w = gather_span_tokens(
        embeddings, span_idx, span_mask, MAX_WIDTH)

    N = B * S
    tile_n, n_tiles = _choose_tiling(N)
    N_pad = tile_n * n_tiles
    if N_pad != N:
        tokens_wnd = jnp.pad(tokens_wnd, ((0, 0), (0, N_pad - N), (0, 0)))
        eff_w = jnp.pad(eff_w, ((0, N_pad - N), (0, 0)))

    logits_row = fused_span_forward(tokens_wnd, eff_w, params, tile_n=tile_n)
    logits = logits_row[0, :N].reshape(span_labels.shape)                  # [B, S]

    # predictions masked by span_mask so invalid spans never emit (0, 0) entities
    predicted_labels = ((jax.nn.sigmoid(logits) >= 0.5)
                        & (span_mask > 0)).astype(jnp.int32)

    # focal loss over valid spans only (span_mask as validity), one-step kernel
    N_loss = max(128, _round_up(N, 128))
    pad = N_loss - N
    lg = jnp.pad(logits.reshape(1, N), ((0, 0), (0, pad)))
    lb = jnp.pad(span_labels.reshape(1, N).astype(jnp.float32), ((0, 0), (0, pad)))
    vd = jnp.pad(span_mask.reshape(1, N).astype(jnp.float32), ((0, 0), (0, pad)))
    loss = focal_loss(lg, lb, vd)

    return predicted_labels.reshape(-1), masked_span_idx, loss


def get_predicted_entity_pos(predicted_labels, span_idx):
    # host-side ragged Python post-processing (no Pallas equivalent by design)
    pl_np = np.asarray(predicted_labels).reshape(span_idx.shape[0], -1)
    si_np = np.asarray(span_idx)
    out = []
    for b in range(si_np.shape[0]):
        out.append([(int(s[0]), int(s[1]))
                    for lab, s in zip(pl_np[b], si_np[b]) if lab == 1])
    return out


def reference_logits(params, tokens_wnd, eff_w):
    """Pure-JAX reference using the same bf16-cast tokens and folded params."""
    toks = tokens_wnd.astype(jnp.float32)                     # (W, N, D)
    attw = params["att_w"][0]                                 # (D,)
    s = jnp.einsum('wnd,d->wn', toks, attw)                   # (W, N)
    width = eff_w[:, 0]                                       # (N,)
    mask = (jnp.arange(MAX_WIDTH)[:, None] < width[None, :]).astype(jnp.float32)
    m = jnp.max(s, axis=0, keepdims=True)
    p = jnp.exp(s - m) * mask
    denom = jnp.maximum(jnp.sum(p, axis=0, keepdims=True), 1e-9)
    rep = jnp.einsum('wn,wnd->nd', p / denom, toks)           # (N, D)
    mu = rep.mean(-1, keepdims=True)
    var = jnp.mean(jnp.square(rep - mu), -1, keepdims=True)
    xhat = (rep - mu) * jax.lax.rsqrt(var + LN_EPS)
    return xhat @ params["gw"][0] + params["b_all"][0, 0]     # (N,)


if __name__ == "__main__":
    B, L, D, S = 2, 16, HIDDEN, 8

    key = jax.random.PRNGKey(0)
    k_emb, k_start, k_len, k_mask, k_lab, k_par = jax.random.split(key, 6)

    embeddings = jax.random.normal(k_emb, (B, L, D), jnp.float32)
    starts = jax.random.randint(k_start, (B, S), 0, L)
    widths = jax.random.randint(k_len, (B, S), 0, MAX_WIDTH)
    ends = jnp.minimum(starts + widths, L - 1)
    span_idx = jnp.stack([starts, ends], axis=-1).astype(jnp.int32)        # [B, S, 2]
    span_mask = (jax.random.uniform(k_mask, (B, S)) > 0.2).astype(jnp.int32)
    span_labels = jax.random.randint(k_lab, (B, S), 0, 2).astype(jnp.int32)
    entity_pos = [[(1, 2)], [(3, 3)]]  # only used by compute_metrics (host-side)

    params = init_params(k_par, HIDDEN)

    predicted_labels, masked_span_idx, loss = mention_detector_forward(
        params, embeddings, span_idx, span_mask, span_labels)
    jax.block_until_ready((predicted_labels, masked_span_idx, loss))

    _ = get_predicted_entity_pos(predicted_labels, masked_span_idx)

    # correctness check of the fused kernel against a pure-JAX reference
    _, tw, ew = gather_span_tokens(embeddings, span_idx, span_mask, MAX_WIDTH)
    N = B * S
    tile_n, n_tiles = _choose_tiling(N)
    N_pad = tile_n * n_tiles
    tw_p = jnp.pad(tw, ((0, 0), (0, N_pad - N), (0, 0)))
    ew_p = jnp.pad(ew, ((0, N_pad - N), (0, 0)))
    k_logits = fused_span_forward(tw_p, ew_p, params, tile_n=tile_n)[0, :N]
    r_logits = reference_logits(params, tw, ew)
    assert bool(jnp.allclose(k_logits, r_logits, atol=2e-2, rtol=2e-2))

    assert predicted_labels.shape == (B * S,)
    assert bool(jnp.isfinite(loss))
    print("KERNEL_OK")
</pallas_src>

<mosaic_0001>
module attributes {stable_mosaic.version = 11 : i64} {
  func.func @fused_span_kernel(%arg0: i32, %arg1: memref<4x16x64xbf16, #tpu.memory_space<vmem>>, %arg2: memref<16x1xi32, #tpu.memory_space<vmem>>, %arg3: memref<1x64xf32, #tpu.memory_space<vmem>>, %arg4: memref<1x64xf32, #tpu.memory_space<vmem>>, %arg5: memref<1x1xf32, #tpu.memory_space<smem>>, %arg6: memref<1x16xf32, #tpu.memory_space<vmem>>) attributes {dimension_semantics = [#tpu.dimension_semantics<parallel>], iteration_bounds = array<i64: 1>, scalar_prefetch = 0 : i64, scratch_operands = 0 : i64, tpu.core_type = #tpu.core_type<tc>, window_params = [{transform_indices = @transform_0, window_bounds = array<i64: 4, 16, 64>}, {transform_indices = @transform_1, window_bounds = array<i64: 16, 1>}, {pipeline_mode = #tpu.pipeline_mode<synchronous>, transform_indices = @transform_2, window_bounds = array<i64: 1, 64>}, {pipeline_mode = #tpu.pipeline_mode<synchronous>, transform_indices = @transform_3, window_bounds = array<i64: 1, 64>}, {transform_indices = @transform_4, window_bounds = array<i64: 1, 1>}, {transform_indices = @transform_5, window_bounds = array<i64: 1, 16>}]} {
    %c0 = arith.constant 0 : index
    %c0_0 = arith.constant 0 : index
    %0 = vector.load %arg3[%c0, %c0_0] : memref<1x64xf32, #tpu.memory_space<vmem>>, vector<1x64xf32>
    %c0_1 = arith.constant 0 : index
    %c0_2 = arith.constant 0 : index
    %1 = vector.load %arg2[%c0_1, %c0_2] : memref<16x1xi32, #tpu.memory_space<vmem>>, vector<16x1xi32>
    %c0_3 = arith.constant 0 : index
    %c0_4 = arith.constant 0 : index
    %c0_5 = arith.constant 0 : index
    %2 = vector.load %arg1[%c0_3, %c0_4, %c0_5] : memref<4x16x64xbf16, #tpu.memory_space<vmem>>, vector<1x16x64xbf16>
    %3 = vector.shape_cast %2 : vector<1x16x64xbf16> to vector<16x64xbf16>
    %4 = arith.extf %3 : vector<16x64xbf16> to vector<16x64xf32>
    %5 = vector.broadcast %0 : vector<1x64xf32> to vector<16x64xf32>
    %6 = arith.mulf %4, %5 : vector<16x64xf32>
    %cst = arith.constant dense<0.000000e+00> : vector<16xf32>
    %7 = vector.multi_reduction <add>, %6, %cst [1] : vector<16x64xf32> to vector<16xf32>
    %8 = vector.shape_cast %7 : vector<16xf32> to vector<16x1xf32>
    %c0_i32 = arith.constant 0 : i32
    %9 = vector.broadcast %c0_i32 : i32 to vector<16x1xi32>
    %10 = arith.cmpi sgt, %1, %9 : vector<16x1xi32>
    %11 = arith.extui %10 : vector<16x1xi1> to vector<16x1xi32>
    %12 = arith.sitofp %11 : vector<16x1xi32> to vector<16x1xf32>
    %13 = vector.broadcast %12 : vector<16x1xf32> to vector<16x64xf32>
    %14 = arith.mulf %13, %4 : vector<16x64xf32>
    %c1 = arith.constant 1 : index
    %c0_6 = arith.constant 0 : index
    %c0_7 = arith.constant 0 : index
    %15 = vector.load %arg1[%c1, %c0_6, %c0_7] : memref<4x16x64xbf16, #tpu.memory_space<vmem>>, vector<1x16x64xbf16>
    %16 = vector.shape_cast %15 : vector<1x16x64xbf16> to vector<16x64xbf16>
    %17 = arith.extf %16 : vector<16x64xbf16> to vector<16x64xf32>
    %18 = vector.broadcast %0 : vector<1x64xf32> to vector<16x64xf32>
    %19 = arith.mulf %17, %18 : vector<16x64xf32>
    %cst_8 = arith.constant dense<0.000000e+00> : vector<16xf32>
    %20 = vector.multi_reduction <add>, %19, %cst_8 [1] : vector<16x64xf32> to vector<16xf32>
    %21 = vector.shape_cast %20 : vector<16xf32> to vector<16x1xf32>
    %c1_i32 = arith.constant 1 : i32
    %22 = vector.broadcast %c1_i32 : i32 to vector<16x1xi32>
    %23 = arith.cmpi sgt, %1, %22 : vector<16x1xi32>
    %24 = arith.extui %23 : vector<16x1xi1> to vector<16x1xi32>
    %25 = arith.sitofp %24 : vector<16x1xi32> to vector<16x1xf32>
    %26 = arith.maximumf %8, %21 : vector<16x1xf32>
    %27 = arith.subf %8, %26 : vector<16x1xf32>
    %28 = math.exp %27 : vector<16x1xf32>
    %29 = arith.subf %21, %26 : vector<16x1xf32>
    %30 = math.exp %29 : vector<16x1xf32>
    %31 = arith.mulf %30, %25 : vector<16x1xf32>
    %32 = arith.mulf %12, %28 : vector<16x1xf32>
    %33 = arith.addf %32, %31 : vector<16x1xf32>
    %34 = vector.broadcast %28 : vector<16x1xf32> to vector<16x64xf32>
    %35 = arith.mulf %14, %34 : vector<16x64xf32>
    %36 = vector.broadcast %31 : vector<16x1xf32> to vector<16x64xf32>
    %37 = arith.mulf %36, %17 : vector<16x64xf32>
    %38 = arith.addf %35, %37 : vector<16x64xf32>
    %c2 = arith.constant 2 : index
    %c0_9 = arith.constant 0 : index
    %c0_10 = arith.constant 0 : index
    %39 = vector.load %arg1[%c2, %c0_9, %c0_10] : memref<4x16x64xbf16, #tpu.memory_space<vmem>>, vector<1x16x64xbf16>
    %40 = vector.shape_cast %39 : vector<1x16x64xbf16> to vector<16x64xbf16>
    %41 = arith.extf %40 : vector<16x64xbf16> to vector<16x64xf32>
    %42 = vector.broadcast %0 : vector<1x64xf32> to vector<16x64xf32>
    %43 = arith.mulf %41, %42 : vector<16x64xf32>
    %cst_11 = arith.constant dense<0.000000e+00> : vector<16xf32>
    %44 = vector.multi_reduction <add>, %43, %cst_11 [1] : vector<16x64xf32> to vector<16xf32>
    %45 = vector.shape_cast %44 : vector<16xf32> to vector<16x1xf32>
    %c2_i32 = arith.constant 2 : i32
    %46 = vector.broadcast %c2_i32 : i32 to vector<16x1xi32>
    %47 = arith.cmpi sgt, %1, %46 : vector<16x1xi32>
    %48 = arith.extui %47 : vector<16x1xi1> to vector<16x1xi32>
    %49 = arith.sitofp %48 : vector<16x1xi32> to vector<16x1xf32>
    %50 = arith.maximumf %26, %45 : vector<16x1xf32>
    %51 = arith.subf %26, %50 : vector<16x1xf32>
    %52 = math.exp %51 : vector<16x1xf32>
    %53 = arith.subf %45, %50 : vector<16x1xf32>
    %54 = math.exp %53 : vector<16x1xf32>
    %55 = arith.mulf %54, %49 : vector<16x1xf32>
    %56 = arith.mulf %33, %52 : vector<16x1xf32>
    %57 = arith.addf %56, %55 : vector<16x1xf32>
    %58 = vector.broadcast %52 : vector<16x1xf32> to vector<16x64xf32>
    %59 = arith.mulf %38, %58 : vector<16x64xf32>
    %60 = vector.broadcast %55 : vector<16x1xf32> to vector<16x64xf32>
    %61 = arith.mulf %60, %41 : vector<16x64xf32>
    %62 = arith.addf %59, %61 : vector<16x64xf32>
    %c3 = arith.constant 3 : index
    %c0_12 = arith.constant 0 : index
    %c0_13 = arith.constant 0 : index
    %63 = vector.load %arg1[%c3, %c0_12, %c0_13] : memref<4x16x64xbf16, #tpu.memory_space<vmem>>, vector<1x16x64xbf16>
    %64 = vector.shape_cast %63 : vector<1x16x64xbf16> to vector<16x64xbf16>
    %65 = arith.extf %64 : vector<16x64xbf16> to vector<16x64xf32>
    %66 = vector.broadcast %0 : vector<1x64xf32> to vector<16x64xf32>
    %67 = arith.mulf %65, %66 : vector<16x64xf32>
    %cst_14 = arith.constant dense<0.000000e+00> : vector<16xf32>
    %68 = vector.multi_reduction <add>, %67, %cst_14 [1] : vector<16x64xf32> to vector<16xf32>
    %69 = vector.shape_cast %68 : vector<16xf32> to vector<16x1xf32>
    %c3_i32 = arith.constant 3 : i32
    %70 = vector.broadcast %c3_i32 : i32 to vector<16x1xi32>
    %71 = arith.cmpi sgt, %1, %70 : vector<16x1xi32>
    %72 = arith.extui %71 : vector<16x1xi1> to vector<16x1xi32>
    %73 = arith.sitofp %72 : vector<16x1xi32> to vector<16x1xf32>
    %74 = arith.maximumf %50, %69 : vector<16x1xf32>
    %75 = arith.subf %50, %74 : vector<16x1xf32>
    %76 = math.exp %75 : vector<16x1xf32>
    %77 = arith.subf %69, %74 : vector<16x1xf32>
    %78 = math.exp %77 : vector<16x1xf32>
    %79 = arith.mulf %78, %73 : vector<16x1xf32>
    %80 = arith.mulf %57, %76 : vector<16x1xf32>
    %81 = arith.addf %80, %79 : vector<16x1xf32>
    %82 = vector.broadcast %76 : vector<16x1xf32> to vector<16x64xf32>
    %83 = arith.mulf %62, %82 : vector<16x64xf32>
    %84 = vector.broadcast %79 : vector<16x1xf32> to vector<16x64xf32>
    %85 = arith.mulf %84, %65 : vector<16x64xf32>
    %86 = arith.addf %83, %85 : vector<16x64xf32>
    %cst_15 = arith.constant 9.99999971E-10 : f32
    %87 = vector.broadcast %cst_15 : f32 to vector<16x1xf32>
    %88 = arith.maximumf %81, %87 : vector<16x1xf32>
    %89 = tpu.reciprocal %88 {approx = true} : vector<16x1xf32> -> vector<16x1xf32>
    %90 = vector.broadcast %89 : vector<16x1xf32> to vector<16x64xf32>
    %91 = arith.mulf %86, %90 : vector<16x64xf32>
    %cst_16 = arith.constant dense<0.000000e+00> : vector<16xf32>
    %92 = vector.multi_reduction <add>, %91, %cst_16 [1] : vector<16x64xf32> to vector<16xf32>
    %93 = vector.shape_cast %92 : vector<16xf32> to vector<16x1xf32>
    %cst_17 = arith.constant 6.400000e+01 : f32
    %94 = vector.broadcast %cst_17 : f32 to vector<16x1xf32>
    %95 = arith.divf %93, %94 : vector<16x1xf32>
    %96 = vector.broadcast %95 : vector<16x1xf32> to vector<16x64xf32>
    %97 = arith.subf %91, %96 : vector<16x64xf32>
    %98 = arith.mulf %97, %97 : vector<16x64xf32>
    %cst_18 = arith.constant dense<0.000000e+00> : vector<16xf32>
    %99 = vector.multi_reduction <add>, %98, %cst_18 [1] : vector<16x64xf32> to vector<16xf32>
    %100 = vector.shape_cast %99 : vector<16xf32> to vector<16x1xf32>
    %cst_19 = arith.constant 6.400000e+01 : f32
    %101 = vector.broadcast %cst_19 : f32 to vector<16x1xf32>
    %102 = arith.divf %100, %101 : vector<16x1xf32>
    %103 = vector.broadcast %95 : vector<16x1xf32> to vector<16x64xf32>
    %104 = arith.subf %91, %103 : vector<16x64xf32>
    %cst_20 = arith.constant 9.99999974E-6 : f32
    %105 = vector.broadcast %cst_20 : f32 to vector<16x1xf32>
    %106 = arith.addf %102, %105 : vector<16x1xf32>
    %107 = math.rsqrt %106 : vector<16x1xf32>
    %108 = vector.broadcast %107 : vector<16x1xf32> to vector<16x64xf32>
    %109 = arith.mulf %104, %108 : vector<16x64xf32>
    %c0_21 = arith.constant 0 : index
    %c0_22 = arith.constant 0 : index
    %110 = vector.load %arg4[%c0_21, %c0_22] : memref<1x64xf32, #tpu.memory_space<vmem>>, vector<1x64xf32>
    %cst_23 = arith.constant dense<0.000000e+00> : vector<1x16xf32>
    %111 = tpu.matmul %110, %109, %cst_23 {dimension_numbers = #tpu.dot_dimension_numbers<[1], [1], [0], [0], [0, 0, 1, 0], [], []>} : vector<1x64xf32>, vector<16x64xf32>, vector<1x16xf32> -> vector<1x16xf32>
    %c0_24 = arith.constant 0 : index
    %c0_25 = arith.constant 0 : index
    %112 = memref.load %arg5[%c0_24, %c0_25] : memref<1x1xf32, #tpu.memory_space<smem>>
    %113 = vector.broadcast %112 : f32 to vector<1x16xf32>
    %114 = arith.addf %111, %113 : vector<1x16xf32>
    %c0_26 = arith.constant 0 : index
    %c0_27 = arith.constant 0 : index
    %115 = vector.load %arg6[%c0_26, %c0_27] : memref<1x16xf32, #tpu.memory_space<vmem>>, vector<1x16xf32>
    tpu.vector_store %arg6[%c0_26, %c0_27], %114 {strides = array<i32>} : memref<1x16xf32, #tpu.memory_space<vmem>>, vector<1x16xf32>,
    return
  }
  func.func @transform_0(%arg0: i32) -> (i32, i32, i32) {
    %c0_i32 = arith.constant 0 : i32
    %c0_i32_0 = arith.constant 0 : i32
    %c0_i32_1 = arith.constant 0 : i32
    return %c0_i32, %arg0, %c0_i32_0 : i32, i32, i32
  }
  func.func @transform_1(%arg0: i32) -> (i32, i32) {
    %c0_i32 = arith.constant 0 : i32
    %c0_i32_0 = arith.constant 0 : i32
    return %arg0, %c0_i32 : i32, i32
  }
  func.func @transform_2(%arg0: i32) -> (i32, i32) {
    %c0_i32 = arith.constant 0 : i32
    %c0_i32_0 = arith.constant 0 : i32
    %c0_i32_1 = arith.constant 0 : i32
    return %c0_i32, %c0_i32_0 : i32, i32
  }
  func.func @transform_3(%arg0: i32) -> (i32, i32) {
    %c0_i32 = arith.constant 0 : i32
    %c0_i32_0 = arith.constant 0 : i32
    %c0_i32_1 = arith.constant 0 : i32
    return %c0_i32, %c0_i32_0 : i32, i32
  }
  func.func @transform_4(%arg0: i32) -> (i32, i32) {
    %c0_i32 = arith.constant 0 : i32
    %c0_i32_0 = arith.constant 0 : i32
    %c0_i32_1 = arith.constant 0 : i32
    return %c0_i32, %c0_i32_0 : i32, i32
  }
  func.func @transform_5(%arg0: i32) -> (i32, i32) {
    %c0_i32 = arith.constant 0 : i32
    %c0_i32_0 = arith.constant 0 : i32
    return %c0_i32, %arg0 : i32, i32
  }
}

module attributes {stable_mosaic.version = 11 : i64} {
  func.func @focal_loss_kernel(%arg0: i32, %arg1: memref<1x128xf32, #tpu.memory_space<vmem>>, %arg2: memref<1x128xf32, #tpu.memory_space<vmem>>, %arg3: memref<1x128xf32, #tpu.memory_space<vmem>>, %arg4: memref<1xf32, #tpu.memory_space<smem>>) attributes {dimension_semantics = [#tpu.dimension_semantics<arbitrary>], iteration_bounds = array<i64: 1>, scalar_prefetch = 0 : i64, scratch_operands = 0 : i64, tpu.core_type = #tpu.core_type<tc>, window_params = [{pipeline_mode = #tpu.pipeline_mode<synchronous>, transform_indices = @transform_0, window_bounds = array<i64: 1, 128>}, {pipeline_mode = #tpu.pipeline_mode<synchronous>, transform_indices = @transform_1, window_bounds = array<i64: 1, 128>}, {pipeline_mode = #tpu.pipeline_mode<synchronous>, transform_indices = @transform_2, window_bounds = array<i64: 1, 128>}, {transform_indices = @transform_3, window_bounds = array<i64: 1>}]} {
    %c0 = arith.constant 0 : index
    %c0_0 = arith.constant 0 : index
    %0 = vector.load %arg1[%c0, %c0_0] : memref<1x128xf32, #tpu.memory_space<vmem>>, vector<1x128xf32>
    %c0_1 = arith.constant 0 : index
    %c0_2 = arith.constant 0 : index
    %1 = vector.load %arg2[%c0_1, %c0_2] : memref<1x128xf32, #tpu.memory_space<vmem>>, vector<1x128xf32>
    %c0_3 = arith.constant 0 : index
    %c0_4 = arith.constant 0 : index
    %2 = vector.load %arg3[%c0_3, %c0_4] : memref<1x128xf32, #tpu.memory_space<vmem>>, vector<1x128xf32>
    %3 = math.absf %0 : vector<1x128xf32>
    %cst = arith.constant 0.000000e+00 : f32
    %4 = vector.broadcast %cst : f32 to vector<1x128xf32>
    %5 = arith.subf %4, %3 : vector<1x128xf32>
    %6 = math.exp %5 : vector<1x128xf32>
    %cst_5 = arith.constant 1.000000e+00 : f32
    %7 = vector.broadcast %cst_5 : f32 to vector<1x128xf32>
    %8 = arith.addf %7, %6 : vector<1x128xf32>
    %9 = math.log %8 : vector<1x128xf32>
    %cst_6 = arith.constant 0.000000e+00 : f32
    %10 = vector.broadcast %cst_6 : f32 to vector<1x128xf32>
    %11 = arith.subf %10, %0 : vector<1x128xf32>
    %cst_7 = arith.constant 0.000000e+00 : f32
    %12 = vector.broadcast %cst_7 : f32 to vector<1x128xf32>
    %13 = arith.maximumf %11, %12 : vector<1x128xf32>
    %14 = arith.addf %13, %9 : vector<1x128xf32>
    %cst_8 = arith.constant 0.000000e+00 : f32
    %15 = vector.broadcast %cst_8 : f32 to vector<1x128xf32>
    %16 = arith.maximumf %0, %15 : vector<1x128xf32>
    %17 = arith.addf %16, %9 : vector<1x128xf32>
    %cst_9 = arith.constant 0.000000e+00 : f32
    %18 = vector.broadcast %cst_9 : f32 to vector<1x128xf32>
    %19 = arith.subf %18, %14 : vector<1x128xf32>
    %20 = math.exp %19 : vector<1x128xf32>
    %cst_10 = arith.constant 1.000000e+00 : f32
    %21 = vector.broadcast %cst_10 : f32 to vector<1x128xf32>
    %22 = arith.subf %21, %20 : vector<1x128xf32>
    %23 = arith.mulf %22, %22 : vector<1x128xf32>
    %cst_11 = arith.constant 2.500000e-01 : f32
    %24 = vector.broadcast %cst_11 : f32 to vector<1x128xf32>
    %25 = arith.mulf %24, %23 : vector<1x128xf32>
    %26 = arith.mulf %25, %1 : vector<1x128xf32>
    %27 = arith.mulf %26, %14 : vector<1x128xf32>
    %28 = arith.mulf %20, %20 : vector<1x128xf32>
    %cst_12 = arith.constant 7.500000e-01 : f32
    %29 = vector.broadcast %cst_12 : f32 to vector<1x128xf32>
    %30 = arith.mulf %29, %28 : vector<1x128xf32>
    %cst_13 = arith.constant 1.000000e+00 : f32
    %31 = vector.broadcast %cst_13 : f32 to vector<1x128xf32>
    %32 = arith.subf %31, %1 : vector<1x128xf32>
    %33 = arith.mulf %30, %32 : vector<1x128xf32>
    %34 = arith.mulf %33, %17 : vector<1x128xf32>
    %35 = arith.addf %27, %34 : vector<1x128xf32>
    %36 = arith.mulf %35, %2 : vector<1x128xf32>
    %37 = vector.shape_cast %36 : vector<1x128xf32> to vector<1x1x128xf32>
    %cst_14 = arith.constant dense<0.000000e+00> : vector<1xf32>
    %38 = vector.multi_reduction <add>, %37, %cst_14 [1, 2] : vector<1x1x128xf32> to vector<1xf32>
    %39 = vector.shape_cast %38 : vector<1xf32> to vector<1x1x1xf32>
    %40 = vector.extract %39[0, 0, 0] : f32 from vector<1x1x1xf32>
    %41 = vector.shape_cast %2 : vector<1x128xf32> to vector<1x1x128xf32>
    %cst_15 = arith.constant dense<0.000000e+00> : vector<1xf32>
    %42 = vector.multi_reduction <add>, %41, %cst_15 [1, 2] : vector<1x1x128xf32> to vector<1xf32>
    %43 = vector.shape_cast %42 : vector<1xf32> to vector<1x1x1xf32>
    %44 = vector.extract %43[0, 0, 0] : f32 from vector<1x1x1xf32>
    %cst_16 = arith.constant 1.000000e+00 : f32
    %45 = arith.maximumf %44, %cst_16 : f32
    %46 = arith.divf %40, %45 : f32
    %c0_17 = arith.constant 0 : index
    %47 = memref.load %arg4[%c0_17] : memref<1xf32, #tpu.memory_space<smem>>
    memref.store %46, %arg4[%c0_17] : memref<1xf32, #tpu.memory_space<smem>>
    return
  }
  func.func @transform_0(%arg0: i32) -> (i32, i32) {
    %c0_i32 = arith.constant 0 : i32
    %c0_i32_0 = arith.constant 0 : i32
    %c0_i32_1 = arith.constant 0 : i32
    return %c0_i32, %c0_i32_0 : i32, i32
  }
  func.func @transform_1(%arg0: i32) -> (i32, i32) {
    %c0_i32 = arith.constant 0 : i32
    %c0_i32_0 = arith.constant 0 : i32
    %c0_i32_1 = arith.constant 0 : i32
    return %c0_i32, %c0_i32_0 : i32, i32
  }
  func.func @transform_2(%arg0: i32) -> (i32, i32) {
    %c0_i32 = arith.constant 0 : i32
    %c0_i32_0 = arith.constant 0 : i32
    %c0_i32_1 = arith.constant 0 : i32
    return %c0_i32, %c0_i32_0 : i32, i32
  }
  func.func @transform_3(%arg0: i32) -> i32 {
    %c0_i32 = arith.constant 0 : i32
    %c0_i32_0 = arith.constant 0 : i32
    return %c0_i32 : i32
  }
}

</mosaic_0001>

<llo_original>
// kernel: mention_detector_forward.3
$region0: #{mention_detector_forward.3}
  #allocation0 [shape = 'u32[]', space=smem, size = 0x4, offset = 0x4, fixed_abs, tag = 'smem constant byte address 0x4 - core index']
  #allocation1 [shape = 'u32[144,128]{1,0:T(1,128)}', space=vmem, size = 0x12000, scoped, tag = 'internal scratch']
  %s0 = inlined_call_operand.vmem [shape: f32[1,128], index: 0, kind: input, shape index: {}]
  %s1 = inlined_call_operand.vmem [shape: f32[1,128], index: 1, kind: input, shape index: {}]
  %s2 = inlined_call_operand.vmem [shape: f32[1,128], index: 2, kind: input, shape index: {}]
  %s3 = inlined_call_operand.hbm [shape: f32[1], index: 3, kind: output, shape index: {}]
  %s4 = sld [smem:[#allocation0]]
  $region22: #{mention_detector_forward.3} parent=0
    _
  %s6 = ssub.s32 1, %s4
  %s7 = scalar_select 0, %s6, %s4
  $region1: #{mention_detector_forward.3} parent=0
    #allocation2 [shape = 'u8[512]{0}', space=smem, size = 0x200, scoped, tag = 'output window, operand 0, single buffered']
    #allocation3 [shape = 's32[1]{0}', space=sflag, size = 0x4, scoped, tag = 'scoped memory for mention_detector_forward.3']
    %8 = vsyncpa [#allocation3], 0
    // Predicated region
    $region2: #{mention_detector_forward.3} parent=1 // pred_check
      _
    $region3: #{mention_detector_forward.3} parent=1 // pred_check_branch
      %10 = sbr.rel (0) target = $region5
    $region4: #{mention_detector_forward.3} parent=1 // pred_region
      _
    $region5: #{mention_detector_forward.3} parent=1 // pred_fallthru
      _
    // Predicated region
    $region6: #{mention_detector_forward.3} parent=1 // pred_check
      _
    $region7: #{mention_detector_forward.3} parent=1 // pred_check_branch
      %12 = sbr.rel (0) target = $region9
    $region8: #{mention_detector_forward.3} parent=1 // pred_region
      _
    $region9: #{mention_detector_forward.3} parent=1 // pred_fallthru
      _
    // Predicated region
    $region10: #{mention_detector_forward.3} parent=1 // pred_check
      _
    $region11: #{mention_detector_forward.3} parent=1 // pred_check_branch
      %14 = sbr.rel (0) target = $region13
    $region12: #{mention_detector_forward.3} parent=1 // pred_region
      _
    $region13: #{mention_detector_forward.3} parent=1 // pred_fallthru
      _
    %v15 = vld [vmem:[%s0] sm:$0x1]
    %v16 = vld [vmem:[%s1] sm:$0x1]
    %v17 = vld [vmem:[%s2] sm:$0x1]
    %v18 = vand.u32 2147483647, %v15
    %v19 = vsub.f32 0.0, %v18
    %v20 = vmul.f32 %v19, 1.442695
    %v21 = vpow.pop %v20
    %v22 = vadd.f32 %v21, 1.0
    %v23 = vlog2.pop %v22
    %v24 = vmul.f32 %v23, 0.6931472
    %v25 = vsub.f32 0.0, %v15
    %v26 = vmax.f32 %v25, 0.0
    %v27 = vadd.f32 %v26, %v24
    %v28 = vmax.f32 %v15, 0.0
    %v29 = vadd.f32 %v28, %v24
    %v30 = vsub.f32 0.0, %v27
    %v31 = vmul.f32 %v30, 1.442695
    %v32 = vpow.pop %v31
    %v33 = vsub.f32 1.0, %v32
    %v34 = vmul.f32 %v33, %v33
    %v35 = vmul.f32 %v34, 0.25
    %v36 = vmul.f32 %v35, %v16
    %v37 = vmul.f32 %v36, %v27
    %v38 = vmul.f32 %v32, %v32
    %v39 = vmul.f32 %v38, 0.75
    %v40 = vsub.f32 1.0, %v16
    %v41 = vmul.f32 %v39, %v40
    %v42 = vmul.f32 %v41, %v29
    %v43 = vadd.f32 %v37, %v42
    %v44 = vmul.f32 %v43, %v17
    %vm45 = vcmask 1040384
    %v46 = vsel %vm45, %v44, 0.0
    %47 = vadd.xlane.f32.xlu0 %v46
    %v48 = vpop.xlane.xlu0 %47
    %v49 = vrot.slane %v48, 4
    %v50 = vadd.f32 %v48, %v49
    %v51 = vrot.slane %v50, 2
    %v52 = vadd.f32 %v50, %v51
    %v53 = vrot.slane %v52, 1
    %v54 = vadd.f32 %v52, %v53
    %s55 = vtos %v54
    %v56 = vsel %vm45, %v17, 0.0
    %57 = vadd.xlane.f32.xlu0 %v56
    %v58 = vpop.xlane.xlu0 %57
    %v59 = vrot.slane %v58, 4
    %v60 = vadd.f32 %v58, %v59
    %v61 = vrot.slane %v60, 2
    %v62 = vadd.f32 %v60, %v61
    %v63 = vrot.slane %v62, 1
    %v64 = vadd.f32 %v62, %v63
    %s65 = vtos %v64
    %s66 = smax.f32 %s65, 1.0
    %v67 = vstv %s66
    %v68 = vrcp.pop %v67
    %s69 = vtos %v68
    %s70 = smul.f32 %s55, %s69
    %s71 = scalar_lea.smem [#allocation2], 0
    %72 = sst [smem:[%s71]] %s70
    // Predicated region
    $region14: #{mention_detector_forward.3} parent=1 // pred_check
      _
    $region15: #{mention_detector_forward.3} parent=1 // pred_check_branch
      %74 = sbr.rel (0) target = $region17
    $region16: #{mention_detector_forward.3} parent=1 // pred_region
      %s76 = ssub.s32 16, 16
      %77 = vsyncadd [#allocation3], %s76
      %80 = dma.smem_to_hbm [#allocation2], 16, %s3, [#allocation3]
    $region17: #{mention_detector_forward.3} parent=1 // pred_fallthru
      _
    // Predicated region
    $region18: #{mention_detector_forward.3} parent=1 // pred_check
      _
    $region19: #{mention_detector_forward.3} parent=1 // pred_check_branch
      %82 = sbr.rel (0) target = $region21
    $region20: #{mention_detector_forward.3} parent=1 // pred_region
      %83 = dma.done [#allocation3], 16
    $region21: #{mention_detector_forward.3} parent=1 // pred_fallthru
      _
    %84 = sfence
    %85 = vsyncpa [#allocation3], 1

// kernel: mention_detector_forward.2
$region0: #{mention_detector_forward.2}
  #allocation0 [shape = 'u32[]', space=smem, size = 0x4, offset = 0x4, fixed_abs, tag = 'smem constant byte address 0x4 - core index']
  #allocation1 [shape = 'u32[144,128]{1,0:T(1,128)}', space=vmem, size = 0x12000, scoped, tag = 'internal scratch']
  #allocation2 [shape = 'f32[1,1]{1,0:T(1,128)S(6)}', space=smem, size = 0x200, scoped, tag = 'scoped memory for mention_detector_forward.2']
  %s0 = inlined_call_operand.vmem [shape: bf16[4,16,64], index: 0, kind: input, shape index: {}]
  %s1 = inlined_call_operand.vmem [shape: s32[16,1], index: 1, kind: input, shape index: {}]
  %s2 = inlined_call_operand.vmem [shape: f32[1,64], index: 2, kind: input, shape index: {}]
  %s3 = inlined_call_operand.vmem [shape: f32[1,64], index: 3, kind: input, shape index: {}]
  %s4 = inlined_call_operand.<no memory space> [shape: f32[1,1], index: 4, kind: input, shape index: {}]
  %s5 = inlined_call_operand.vmem [shape: f32[1,16], index: 5, kind: output, shape index: {}]
  %s6 = sld [smem:[#allocation0]]
  $region30: #{mention_detector_forward.2} parent=0
    _
  %s8 = ssub.s32 1, %s6
  %s9 = scalar_select 0, %s8, %s6
  %10 = sst [smem:[#allocation2]] %s4
  // Predicated region
  $region2: #{mention_detector_forward.2} parent=0 // pred_check
    _
  $region3: #{mention_detector_forward.2} parent=0 // pred_check_branch
    %12 = sbr.rel (0) target = $region5
  $region4: #{mention_detector_forward.2} parent=0 // pred_region
    _
  $region5: #{mention_detector_forward.2} parent=0 // pred_fallthru
    _
  // Predicated region
  $region6: #{mention_detector_forward.2} parent=0 // pred_check
    _
  $region7: #{mention_detector_forward.2} parent=0 // pred_check_branch
    %14 = sbr.rel (0) target = $region9
  $region8: #{mention_detector_forward.2} parent=0 // pred_region
    _
  $region9: #{mention_detector_forward.2} parent=0 // pred_fallthru
    _
  // Predicated region
  $region10: #{mention_detector_forward.2} parent=0 // pred_check
    _
  $region11: #{mention_detector_forward.2} parent=0 // pred_check_branch
    %16 = sbr.rel (0) target = $region13
  $region12: #{mention_detector_forward.2} parent=0 // pred_region
    _
  $region13: #{mention_detector_forward.2} parent=0 // pred_fallthru
    _
  // Predicated region
  $region14: #{mention_detector_forward.2} parent=0 // pred_check
    _
  $region15: #{mention_detector_forward.2} parent=0 // pred_check_branch
    %18 = sbr.rel (0) target = $region17
  $region16: #{mention_detector_forward.2} parent=0 // pred_region
    _
  $region17: #{mention_detector_forward.2} parent=0 // pred_fallthru
    _
  // Predicated region
  $region18: #{mention_detector_forward.2} parent=0 // pred_check
    _
  $region19: #{mention_detector_forward.2} parent=0 // pred_check_branch
    %20 = sbr.rel (0) target = $region21
  $region20: #{mention_detector_forward.2} parent=0 // pred_region
    _
  $region21: #{mention_detector_forward.2} parent=0 // pred_fallthru
    _
  %v21 = vld [vmem:[%s2] sm:$0x1]
  %v22 = vld [vmem:[%s1] sm:$0xff]
  %v23 = vld [vmem:[%s1 + $0x8] sm:$0xff]
  %v24 = vld [vmem:[%s0] sm:$0xf]
  %v25 = vld [vmem:[%s0 + $0x4] sm:$0xf]
  %v26 = vunpack.c.l.bf16 %v24
  %v27 = vunpack.c.l.bf16 %v25
  %v29 = vlaneseq
  %v30 = vshrl.u32 %v29, 7
  %v31 = vsub.s32 0, %v30
  %v32 = vrot.slane %v21, %v31
  %v34 = vmul.f32 %v26, %v32
  %v35 = vmul.f32 %v27, %v32
  %vm36 = vcmask 523264
  %v37 = vsel %vm36, %v34, 0.0
  %38 = vadd.xlane.f32.xlu0 %v37
  %v39 = vpop.xlane.xlu0 %38
  %v40 = vsel %vm36, %v35, 0.0
  %41 = vadd.xlane.f32.xlu0 %v40
  %v42 = vpop.xlane.xlu0 %41
  %vm43 = vcmp.gt.s32.totalorder %v22, 0
  %vm44 = vcmp.gt.s32.totalorder %v23, 0
  %v45 = vsel %vm43, 1, 0
  %v46 = vsel %vm44, 1, 0
  %v47 = vcvt.s32.f32 %v45
  %v48 = vcvt.s32.f32 %v46
  %50 = vset.pattern.permute.xlu0 0
  %51 = vperm.xlu0 %50, %v47
  %v52 = vpop.permute.xlu0 %51
  %55 = vset.pattern.permute.xlu0 0
  %56 = vperm.xlu0 %55, %v48
  %v57 = vpop.permute.xlu0 %56
  %v59 = vmul.f32 %v52, %v26
  %v60 = vmul.f32 %v57, %v27
  %s61 = scalar_lea.vmem %s0, 8
  %v62 = vld [vmem:[%s61] sm:$0xf]
  %v63 = vld [vmem:[%s61 + $0x4] sm:$0xf]
  %v64 = vunpack.c.l.bf16 %v62
  %v65 = vunpack.c.l.bf16 %v63
  %v66 = vmul.f32 %v64, %v32
  %v67 = vmul.f32 %v65, %v32
  %v68 = vsel %vm36, %v66, 0.0
  %69 = vadd.xlane.f32.xlu0 %v68
  %v70 = vpop.xlane.xlu0 %69
  %v71 = vsel %vm36, %v67, 0.0
  %72 = vadd.xlane.f32.xlu0 %v71
  %v73 = vpop.xlane.xlu0 %72
  %vm74 = vcmp.gt.s32.totalorder %v22, 1
  %vm75 = vcmp.gt.s32.totalorder %v23, 1
  %v76 = vsel %vm74, 1, 0
  %v77 = vsel %vm75, 1, 0
  %v78 = vcvt.s32.f32 %v76
  %v79 = vcvt.s32.f32 %v77
  %v80 = vmax.f32 %v39, %v70
  %v81 = vmax.f32 %v42, %v73
  %v82 = vsub.f32 %v39, %v80
  %v83 = vsub.f32 %v42, %v81
  %v84 = vmul.f32 %v82, 1.442695
  %v85 = vpow.pop %v84
  %v86 = vmul.f32 %v83, 1.442695
  %v87 = vpow.pop %v86
  %v88 = vsub.f32 %v70, %v80
  %v89 = vsub.f32 %v73, %v81
  %v90 = vmul.f32 %v88, 1.442695
  %v91 = vpow.pop %v90
  %v92 = vmul.f32 %v89, 1.442695
  %v93 = vpow.pop %v92
  %v94 = vmul.f32 %v91, %v78
  %v95 = vmul.f32 %v93, %v79
  %v96 = vmul.f32 %v47, %v85
  %v97 = vmul.f32 %v48, %v87
  %v98 = vadd.f32 %v96, %v94
  %v99 = vadd.f32 %v97, %v95
  %v100 = vmul.f32 %v59, %v85
  %v101 = vmul.f32 %v60, %v87
  %103 = vset.pattern.permute.xlu0 0
  %104 = vperm.xlu0 %103, %v94
  %v105 = vpop.permute.xlu0 %104
  %108 = vset.pattern.permute.xlu0 0
  %109 = vperm.xlu0 %108, %v95
  %v110 = vpop.permute.xlu0 %109
  %v112 = vmul.f32 %v105, %v64
  %v113 = vmul.f32 %v110, %v65
  %v114 = vadd.f32 %v100, %v112
  %v115 = vadd.f32 %v101, %v113
  %s116 = scalar_lea.vmem %s0, 16
  %v117 = vld [vmem:[%s116] sm:$0xf]
  %v118 = vld [vmem:[%s116 + $0x4] sm:$0xf]
  %v119 = vunpack.c.l.bf16 %v117
  %v120 = vunpack.c.l.bf16 %v118
  %v121 = vmul.f32 %v119, %v32
  %v122 = vmul.f32 %v120, %v32
  %v123 = vsel %vm36, %v121, 0.0
  %124 = vadd.xlane.f32.xlu0 %v123
  %v125 = vpop.xlane.xlu0 %124
  %v126 = vsel %vm36, %v122, 0.0
  %127 = vadd.xlane.f32.xlu0 %v126
  %v128 = vpop.xlane.xlu0 %127
  %vm129 = vcmp.gt.s32.totalorder %v22, 2
  %vm130 = vcmp.gt.s32.totalorder %v23, 2
  %v131 = vsel %vm129, 1, 0
  %v132 = vsel %vm130, 1, 0
  %v133 = vcvt.s32.f32 %v131
  %v134 = vcvt.s32.f32 %v132
  %v135 = vmax.f32 %v80, %v125
  %v136 = vmax.f32 %v81, %v128
  %v137 = vsub.f32 %v80, %v135
  %v138 = vsub.f32 %v81, %v136
  %v139 = vmul.f32 %v137, 1.442695
  %v140 = vpow.pop %v139
  %v141 = vmul.f32 %v138, 1.442695
  %v142 = vpow.pop %v141
  %v143 = vsub.f32 %v125, %v135
  %v144 = vsub.f32 %v128, %v136
  %v145 = vmul.f32 %v143, 1.442695
  %v146 = vpow.pop %v145
  %v147 = vmul.f32 %v144, 1.442695
  %v148 = vpow.pop %v147
  %v149 = vmul.f32 %v146, %v133
  %v150 = vmul.f32 %v148, %v134
  %v151 = vmul.f32 %v98, %v140
  %v152 = vmul.f32 %v99, %v142
  %v153 = vadd.f32 %v151, %v149
  %v154 = vadd.f32 %v152, %v150
  %v155 = vmul.f32 %v114, %v140
  %v156 = vmul.f32 %v115, %v142
  %158 = vset.pattern.permute.xlu0 0
  %159 = vperm.xlu0 %158, %v149
  %v160 = vpop.permute.xlu0 %159
  %163 = vset.pattern.permute.xlu0 0
  %164 = vperm.xlu0 %163, %v150
  %v165 = vpop.permute.xlu0 %164
  %v167 = vmul.f32 %v160, %v119
  %v168 = vmul.f32 %v165, %v120
  %v169 = vadd.f32 %v155, %v167
  %v170 = vadd.f32 %v156, %v168
  %s171 = scalar_lea.vmem %s0, 24
  %v172 = vld [vmem:[%s171] sm:$0xf]
  %v173 = vld [vmem:[%s171 + $0x4] sm:$0xf]
  %v174 = vunpack.c.l.bf16 %v172
  %v175 = vunpack.c.l.bf16 %v173
  %v176 = vmul.f32 %v174, %v32
  %v177 = vmul.f32 %v175, %v32
  %v178 = vsel %vm36, %v176, 0.0
  %179 = vadd.xlane.f32.xlu0 %v178
  %v180 = vpop.xlane.xlu0 %179
  %v181 = vsel %vm36, %v177, 0.0
  %182 = vadd.xlane.f32.xlu0 %v181
  %v183 = vpop.xlane.xlu0 %182
  %vm184 = vcmp.gt.s32.totalorder %v22, 3
  %vm185 = vcmp.gt.s32.totalorder %v23, 3
  %v186 = vsel %vm184, 1, 0
  %v187 = vsel %vm185, 1, 0
  %v188 = vcvt.s32.f32 %v186
  %v189 = vcvt.s32.f32 %v187
  %v190 = vmax.f32 %v135, %v180
  %v191 = vmax.f32 %v136, %v183
  %v192 = vsub.f32 %v135, %v190
  %v193 = vsub.f32 %v136, %v191
  %v194 = vmul.f32 %v192, 1.442695
  %v195 = vpow.pop %v194
  %v196 = vmul.f32 %v193, 1.442695
  %v197 = vpow.pop %v196
  %v198 = vsub.f32 %v180, %v190
  %v199 = vsub.f32 %v183, %v191
  %v200 = vmul.f32 %v198, 1.442695
  %v201 = vpow.pop %v200
  %v202 = vmul.f32 %v199, 1.442695
  %v203 = vpow.pop %v202
  %v204 = vmul.f32 %v201, %v188
  %v205 = vmul.f32 %v203, %v189
  %v206 = vmul.f32 %v153, %v195
  %v207 = vmul.f32 %v154, %v197
  %v208 = vadd.f32 %v206, %v204
  %v209 = vadd.f32 %v207, %v205
  %v210 = vmul.f32 %v169, %v195
  %v211 = vmul.f32 %v170, %v197
  %213 = vset.pattern.permute.xlu0 0
  %214 = vperm.xlu0 %213, %v204
  %v215 = vpop.permute.xlu0 %214
  %218 = vset.pattern.permute.xlu0 0
  %219 = vperm.xlu0 %218, %v205
  %v220 = vpop.permute.xlu0 %219
  %v222 = vmul.f32 %v215, %v174
  %v223 = vmul.f32 %v220, %v175
  %v224 = vadd.f32 %v210, %v222
  %v225 = vadd.f32 %v211, %v223
  %v226 = vmax.f32 %v208, 1e-09
  %v227 = vmax.f32 %v209, 1e-09
  %v228 = vrcp.pop %v226
  %v229 = vrcp.pop %v227
  %231 = vset.pattern.permute.xlu0 0
  %232 = vperm.xlu0 %231, %v228
  %v233 = vpop.permute.xlu0 %232
  %236 = vset.pattern.permute.xlu0 0
  %237 = vperm.xlu0 %236, %v229
  %v238 = vpop.permute.xlu0 %237
  %v240 = vmul.f32 %v224, %v233
  %v241 = vmul.f32 %v225, %v238
  %v242 = vsel %vm36, %v240, 0.0
  %243 = vadd.xlane.f32.xlu0 %v242
  %v244 = vpop.xlane.xlu0 %243
  %v245 = vsel %vm36, %v241, 0.0
  %246 = vadd.xlane.f32.xlu0 %v245
  %v247 = vpop.xlane.xlu0 %246
  %v248 = vrcp.pop 64.0
  %v249 = vmul.f32 %v244, %v248
  %v250 = vmul.f32 %v247, %v248
  %v251 = vsub.f32 %v240, %v249
  %v252 = vsub.f32 %v241, %v250
  %v253 = vmul.f32 %v251, %v251
  %v254 = vmul.f32 %v252, %v252
  %v255 = vsel %vm36, %v253, 0.0
  %256 = vadd.xlane.f32.xlu0 %v255
  %v257 = vpop.xlane.xlu0 %256
  %v258 = vsel %vm36, %v254, 0.0
  %259 = vadd.xlane.f32.xlu0 %v258
  %v260 = vpop.xlane.xlu0 %259
  %v261 = vmul.f32 %v257, %v248
  %v262 = vmul.f32 %v260, %v248
  %v263 = vadd.f32 %v261, 1e-05
  %v264 = vadd.f32 %v262, 1e-05
  %v265 = vrsqrt.pop %v263
  %v266 = vrsqrt.pop %v264
  %v267 = vmul.f32 %v251, %v265
  %v268 = vmul.f32 %v252, %v266
  %v269 = vld [vmem:[%s3] sm:$0x1]
  %s270 = sld [smem:[#allocation2]]
  %v271 = vstv %s270
  %v273 = vsel %vm36, %v269, 0
  %v276 = vsel %vm36, %v267, 0
  %v279 = vsel %vm36, %v268, 0
  %281 = vmatprep.subr.mxu0 0.0
  %282 = vmatpush1.xpose.msra.mxu0 0.0
  %283 = vmatprep.subr.mxu0 0.0
  %284 = vmatpush1.xpose.msra.mxu0 0.0
  %285 = vmatprep.subr.mxu0 0.0
  %286 = vmatpush1.xpose.msra.mxu0 0.0
  %287 = vmatprep.subr.mxu0 0.0
  %288 = vmatpush1.xpose.msra.mxu0 0.0
  %289 = vmatprep.subr.mxu0 0.0
  %290 = vmatpush1.xpose.msra.mxu0 0.0
  %291 = vmatprep.subr.mxu0 0.0
  %292 = vmatpush1.xpose.msra.mxu0 0.0
  %293 = vmatprep.subr.mxu0 0.0
  %294 = vmatpush1.xpose.msra.mxu0 0.0
  %295 = vmatprep.subr.mxu0 0.0
  %296 = vmatpush1.xpose.msra.mxu0 0.0
  %297 = vmatprep.subr.mxu0 0.0
  %298 = vmatpush1.xpose.msra.mxu0 0.0
  %299 = vmatprep.subr.mxu0 0.0
  %300 = vmatpush1.xpose.msra.mxu0 0.0
  %301 = vmatprep.subr.mxu0 0.0
  %302 = vmatpush1.xpose.msra.mxu0 0.0
  %303 = vmatprep.subr.mxu0 0.0
  %304 = vmatpush1.xpose.msra.mxu0 0.0
  %305 = vmatprep.subr.mxu0 0.0
  %306 = vmatpush1.xpose.msra.mxu0 0.0
  %307 = vmatprep.subr.mxu0 0.0
  %308 = vmatpush1.xpose.msra.mxu0 0.0
  %309 = vmatprep.subr.mxu0 0.0
  %310 = vmatpush1.xpose.msra.mxu0 %v279
  %311 = vmatprep.subr.mxu0 0.0
  %312 = vmatpush1.xpose.msra.mxu0 %v276
  %313 = vmatprep.subr.mxu0 0.0
  %314 = vmatpush2.xpose.msra.mxu0 0.0
  %315 = vmatprep.subr.mxu0 0.0
  %316 = vmatpush2.xpose.msra.mxu0 0.0
  %317 = vmatprep.subr.mxu0 0.0
  %318 = vmatpush2.xpose.msra.mxu0 0.0
  %319 = vmatprep.subr.mxu0 0.0
  %320 = vmatpush2.xpose.msra.mxu0 0.0
  %321 = vmatprep.subr.mxu0 0.0
  %322 = vmatpush2.xpose.msra.mxu0 0.0
  %323 = vmatprep.subr.mxu0 0.0
  %324 = vmatpush2.xpose.msra.mxu0 0.0
  %325 = vmatprep.subr.mxu0 0.0
  %326 = vmatpush2.xpose.msra.mxu0 0.0
  %327 = vmatprep.subr.mxu0 0.0
  %328 = vmatpush2.xpose.msra.mxu0 0.0
  %329 = vmatprep.subr.mxu0 0.0
  %330 = vmatpush2.xpose.msra.mxu0 0.0
  %331 = vmatprep.subr.mxu0 0.0
  %332 = vmatpush2.xpose.msra.mxu0 0.0
  %333 = vmatprep.subr.mxu0 0.0
  %334 = vmatpush2.xpose.msra.mxu0 0.0
  %335 = vmatprep.subr.mxu0 0.0
  %336 = vmatpush2.xpose.msra.mxu0 0.0
  %337 = vmatprep.subr.mxu0 0.0
  %338 = vmatpush2.xpose.msra.mxu0 0.0
  %339 = vmatprep.subr.mxu0 0.0
  %340 = vmatpush2.xpose.msra.mxu0 0.0
  %341 = vmatprep.subr.mxu0 0.0
  %342 = vmatpush2.xpose.msra.mxu0 0.0
  %343 = vmatprep.subr.mxu0 0.0
  %344 = vmatpush2.xpose.msra.mxu0 0.0
  %345 = vmatprep.mubr.f32.mxu0 0.0
  %346 = vmatmul.mubr.f32.gmra.mxu0 %v273
  %v347 = vpop.f32.mrf.mxu0
  %v348 = vadd.f32 %v271, %v347
  %v349 = vpop.f32.mrf.mxu0
  %350 = vdwg.mxu0
  %vm351 = vcmask 122880
  %352 = vst.msk [vmem:[%s5] sm:$0x1] %vm351, %v348
  // Predicated region
  $region22: #{mention_detector_forward.2} parent=0 // pred_check
    _
  $region23: #{mention_detector_forward.2} parent=0 // pred_check_branch
    %354 = sbr.rel (0) target = $region25
  $region24: #{mention_detector_forward.2} parent=0 // pred_region
    _
  $region25: #{mention_detector_forward.2} parent=0 // pred_fallthru
    _
  // Predicated region
  $region26: #{mention_detector_forward.2} parent=0 // pred_check
    _
  $region27: #{mention_detector_forward.2} parent=0 // pred_check_branch
    %356 = sbr.rel (0) target = $region29
  $region28: #{mention_detector_forward.2} parent=0 // pred_region
    _
  $region29: #{mention_detector_forward.2} parent=0 // pred_fallthru
    _

</llo_original>
